<compile_context>
chip_gen: v6e
topology: v6e:2x2x1
jax: 0.10.0
libtpu: 0.0.40
codegen_flags: <defaults>
</compile_context>

<pallas_src>
import jax
import jax.numpy as jnp
import numpy as np
from jax import lax
from jax.experimental import pallas as pl
from jax.experimental.pallas import tpu as pltpu

_LANE = 128
_SUBLANE = 8


def _pad_up(n, m=_LANE):
    return ((n + m - 1) // m) * m


def _pad2d(a, rows, cols, dtype=jnp.float32):
    """Cast to `dtype` and zero-pad a 2-D array to (rows, cols)."""
    a = jnp.asarray(a, dtype)
    out = jnp.zeros((rows, cols), dtype)
    return out.at[: a.shape[0], : a.shape[1]].set(a)


def _bf16_round(a):
    """Round-trip through bf16 (matches what the kernel feeds the MXU)."""
    return jnp.asarray(a, jnp.bfloat16).astype(jnp.float32)


# ----------------------------------------------------------------------------
# Fused kernel: for each layer i
#   z      = act @ W_i (+ b_i)                  (MXU, bf16 operands, f32 acc)
#   v_new  = v_i * v_decay + z                  (VPU, f32)
#   spiked = (v_new > v_thresh).float()
#   v_i    = v_new - spiked*(v_thresh - v_rest)  [reset_by_sub]
#   act    = spiked   (or v_new for a non_spiking last layer)
# repeated n_steps times with the same input x (stateful SNN stepping).
# Zero-padded lanes stay exactly 0 (0*decay + 0 = 0, never crosses threshold),
# so padding never contaminates real outputs.
# ----------------------------------------------------------------------------
def _make_fused_snn_kernel(n_layers, has_bias, non_spiking_last, n_steps,
                           v_decay, v_thresh, v_rest):
    assert n_steps >= 1
    n_bias = sum(has_bias)
    reset_amt = float(v_thresh - v_rest)

    # Map layer index -> position in the bias-ref list (None if bias=False).
    bias_pos = []
    bi = 0
    for i in range(n_layers):
        if has_bias[i]:
            bias_pos.append(bi)
            bi += 1
        else:
            bias_pos.append(None)

    def kernel(*refs):
        x_ref = refs[0]
        w_refs = refs[1:1 + n_layers]
        b_refs = refs[1 + n_layers:1 + n_layers + n_bias]
        v_refs = refs[1 + n_layers + n_bias:1 + 2 * n_layers + n_bias]
        out_ref = refs[1 + 2 * n_layers + n_bias]
        v_out_refs = refs[2 + 2 * n_layers + n_bias:]

        # Loop-invariant layer-0 matmul hoisted out of the timestep loop:
        # layer 0's input is always x, so compute it exactly once.
        z0 = jnp.dot(x_ref[...], w_refs[0][...],
                     preferred_element_type=jnp.float32)
        if bias_pos[0] is not None:
            z0 = z0 + b_refs[bias_pos[0]][...]

        def lif(i, v_old, z):
            v_new = v_old * v_decay + z
            if non_spiking_last and i == n_layers - 1:
                return v_new, v_new
            spiked = (v_new > v_thresh).astype(jnp.float32)
            return spiked, v_new - spiked * reset_amt

        def one_step(vs):
            new_vs = [None] * n_layers
            act, new_vs[0] = lif(0, vs[0], z0)
            for i in range(1, n_layers):
                # Weights are read per-use from VMEM (not hoisted into values
                # that live across the whole unrolled loop) -> no spills.
                z = jnp.dot(act.astype(jnp.bfloat16), w_refs[i][...],
                            preferred_element_type=jnp.float32)
                if bias_pos[i] is not None:
                    z = z + b_refs[bias_pos[i]][...]
                act, new_vs[i] = lif(i, vs[i], z)
            return act, tuple(new_vs)

        vs = tuple(v_refs[i][...] for i in range(n_layers))
        if n_steps <= 8:
            # Short static trip count: unroll in Python for LLO visibility.
            out = None
            for _ in range(n_steps):
                out, vs = one_step(vs)
        else:
            # Carry only the membrane state; peel the final step so the output
            # comes straight from it (no dead zeros-initialized carry).
            def body(_, cur_vs):
                return one_step(cur_vs)[1]
            vs = lax.fori_loop(0, n_steps - 1, body, vs, unroll=4)
            out, vs = one_step(vs)

        out_ref[...] = out
        for i in range(n_layers):
            v_out_refs[i][...] = vs[i]

    return kernel


# ----------------------------------------------------------------------------
# NeuralNet (forward pass only), dropout=False path (default): every layer is
# nn.Linear (layer 0 bias=False) followed by Spiking (LIF, reset_by_sub=True).
# ----------------------------------------------------------------------------
class NeuralNetPallas:
    V_DECAY = 0.9
    V_THRESH = 1.0
    V_REST = 0.0

    def __init__(self, input_size, hidden_size, num_classes, key,
                 non_spiking_output=False):
        sizes = [input_size] + list(hidden_size) + [num_classes]
        self.sizes = sizes
        self.n_layers = len(sizes) - 1
        self.non_spiking_output = non_spiking_output
        self.has_bias = tuple([False] + [True] * (self.n_layers - 1))

        # PyTorch-style parameters (out, in) kept for the reference check.
        self.weights = []
        self.biases = []
        for i in range(self.n_layers):
            key, wk, bk = jax.random.split(key, 3)
            bound = 1.0 / np.sqrt(sizes[i])
            w = jax.random.uniform(wk, (sizes[i + 1], sizes[i]),
                                   minval=-bound, maxval=bound,
                                   dtype=jnp.float32)
            self.weights.append(w)
            if self.has_bias[i]:
                b = jax.random.uniform(bk, (sizes[i + 1],),
                                       minval=-bound, maxval=bound,
                                       dtype=jnp.float32)
            else:
                b = None
            self.biases.append(b)

        # Kernel-ready parameters, built ONCE here:
        #   weights: transposed to (in, out), zero-padded to 128-lane
        #            multiples, stored bf16 (MXU-native);
        #   biases : replicated to 8 sublanes, lane-padded, f32 (added after
        #            the f32 accumulation).
        self.in_pad = _pad_up(sizes[0])
        self.out_pads = [_pad_up(sizes[i + 1]) for i in range(self.n_layers)]
        in_pads = [self.in_pad] + self.out_pads[:-1]
        self.w_pad = tuple(
            _pad2d(self.weights[i].T, in_pads[i], self.out_pads[i],
                   dtype=jnp.bfloat16)
            for i in range(self.n_layers))
        self.b_pad = tuple(
            _pad2d(jnp.broadcast_to(self.biases[i].reshape(1, -1),
                                    (_SUBLANE, sizes[i + 1])),
                   _SUBLANE, self.out_pads[i], dtype=jnp.float32)
            for i in range(self.n_layers) if self.has_bias[i])

        # Spiking membrane state (v_rest = 0), (8, lane-padded) f32 tiles.
        self.v = tuple(jnp.zeros((_SUBLANE, self.out_pads[i]), jnp.float32)
                       for i in range(self.n_layers))

        self._fns = {}  # n_steps -> jitted forward fn

    # Build the kernel-layout input ONCE (re-usable across forward() calls).
    def prepare_input(self, x):
        x = jnp.asarray(x, jnp.float32).reshape(-1)
        x_pad = jnp.zeros((_SUBLANE, self.in_pad), jnp.bfloat16)
        return x_pad.at[0, :x.shape[0]].set(x.astype(jnp.bfloat16))

    def _is_prepared(self, x):
        return (hasattr(x, "shape") and tuple(x.shape) == (_SUBLANE, self.in_pad)
                and x.dtype == jnp.bfloat16)

    def _forward_fn(self, n_steps):
        if n_steps in self._fns:
            return self._fns[n_steps]

        n = self.n_layers
        n_bias = sum(self.has_bias)
        kernel = _make_fused_snn_kernel(
            n, self.has_bias, self.non_spiking_output, n_steps,
            self.V_DECAY, self.V_THRESH, self.V_REST)

        vmem = pl.BlockSpec(memory_space=pltpu.MemorySpace.VMEM)
        n_inputs = 1 + n + n_bias + n
        out_shape = tuple(
            [jax.ShapeDtypeStruct((_SUBLANE, self.out_pads[-1]), jnp.float32)] +
            [jax.ShapeDtypeStruct((_SUBLANE, self.out_pads[i]), jnp.float32)
             for i in range(n)])
        call = pl.pallas_call(
            kernel,
            out_shape=out_shape,
            in_specs=[vmem] * n_inputs,
            out_specs=(vmem,) * (n + 1),
            # In-place membrane-state update: v_i input -> v_i output.
            input_output_aliases={1 + n + n_bias + i: 1 + i for i in range(n)},
        )

        num_classes = self.sizes[-1]

        def fn(x_pad, w_pad, b_pad, v):
            outs = call(x_pad, *w_pad, *b_pad, *v)
            out = outs[0][0, :num_classes]
            return out, tuple(outs[1:])

        jfn = jax.jit(fn)
        self._fns[n_steps] = jfn
        return jfn

    def forward(self, x, n_steps=1):
        """Run the SNN n_steps times with the same input x (fused in-kernel)."""
        if not self._is_prepared(x):
            x = self.prepare_input(x)
        fn = self._forward_fn(n_steps)
        out, new_v = fn(x, self.w_pad, self.b_pad, self.v)
        self.v = new_v
        return out


# ----------------------------------------------------------------------------
# Pure-JAX reference matching the kernel numerics (bf16-rounded MXU operands,
# f32 accumulation, f32 LIF math) for the correctness check.
# ----------------------------------------------------------------------------
def reference_forward_steps(x, weights, biases, non_spiking_output, n_steps):
    n = len(weights)
    ws = [_bf16_round(w) for w in weights]
    vs = [jnp.zeros((w.shape[0],), jnp.float32) for w in weights]
    out = None
    for _ in range(n_steps):
        act = jnp.asarray(x, jnp.float32)
        for i in range(n):
            z = _bf16_round(act) @ ws[i].T
            if biases[i] is not None:
                z = z + biases[i]
            v = vs[i] * 0.9 + z
            if non_spiking_output and i == n - 1:
                vs[i] = v
                act = v
            else:
                spiked = (v > 1.0).astype(jnp.float32)
                vs[i] = v - spiked * 1.0
                act = spiked
        out = act
    return out, vs


if __name__ == "__main__":
    input_size = 32
    hidden_size = [64, 48]
    num_classes = 16

    key = jax.random.PRNGKey(0)
    key, xkey, pkey = jax.random.split(key, 3)
    x = jax.random.uniform(xkey, (input_size,), dtype=jnp.float32)

    # --- spiking output, two stateful single-step forwards -------------------
    net = NeuralNetPallas(input_size, hidden_size, num_classes, pkey,
                          non_spiking_output=False)
    x_pad = net.prepare_input(x)          # built once, reused across forwards
    out1 = net.forward(x_pad)
    out2 = jax.block_until_ready(net.forward(x_pad))

    ref_out1, _ = reference_forward_steps(x, net.weights, net.biases, False, 1)
    ref_out2, ref_vs2 = reference_forward_steps(x, net.weights, net.biases,
                                                False, 2)
    assert out2.shape == (num_classes,)
    np.testing.assert_allclose(np.asarray(out1), np.asarray(ref_out1),
                               rtol=1e-3, atol=1e-3)
    np.testing.assert_allclose(np.asarray(out2), np.asarray(ref_out2),
                               rtol=1e-3, atol=1e-3)
    for i in range(net.n_layers):
        np.testing.assert_allclose(
            np.asarray(net.v[i])[0, :net.sizes[i + 1]],
            np.asarray(ref_vs2[i]), rtol=1e-3, atol=1e-3)

    # --- same params, both timesteps fused inside ONE kernel call ------------
    net2 = NeuralNetPallas(input_size, hidden_size, num_classes, pkey,
                           non_spiking_output=False)
    out_T = jax.block_until_ready(net2.forward(x, n_steps=2))
    np.testing.assert_allclose(np.asarray(out_T), np.asarray(ref_out2),
                               rtol=1e-3, atol=1e-3)
    for i in range(net2.n_layers):
        np.testing.assert_allclose(
            np.asarray(net2.v[i])[0, :net2.sizes[i + 1]],
            np.asarray(ref_vs2[i]), rtol=1e-3, atol=1e-3)

    # --- non_spiking_output=True path (last layer returns membrane potential) -
    net3 = NeuralNetPallas(input_size, hidden_size, num_classes, pkey,
                           non_spiking_output=True)
    out_ns = jax.block_until_ready(net3.forward(x))
    ref_ns, _ = reference_forward_steps(x, net3.weights, net3.biases, True, 1)
    np.testing.assert_allclose(np.asarray(out_ns), np.asarray(ref_ns),
                               rtol=1e-3, atol=1e-3)

    # TODO(synk): MyDropout training-mode stochastic masks (dropout=True path)
    # and the pde_forward weight-update path are not implemented; forward()
    # with default dropout=False (eval semantics) needs neither.
    print("KERNEL_OK")
</pallas_src>

<mosaic_0001>
module attributes {stable_mosaic.version = 11 : i64} {
  func.func @kernel(%arg0: memref<8x128xbf16, #tpu.memory_space<vmem>>, %arg1: memref<128x128xbf16, #tpu.memory_space<vmem>>, %arg2: memref<128x128xbf16, #tpu.memory_space<vmem>>, %arg3: memref<128x128xbf16, #tpu.memory_space<vmem>>, %arg4: memref<8x128xf32, #tpu.memory_space<vmem>>, %arg5: memref<8x128xf32, #tpu.memory_space<vmem>>, %arg6: memref<8x128xf32, #tpu.memory_space<vmem>>, %arg7: memref<8x128xf32, #tpu.memory_space<vmem>>, %arg8: memref<8x128xf32, #tpu.memory_space<vmem>>, %arg9: memref<8x128xf32, #tpu.memory_space<vmem>>, %arg10: memref<8x128xf32, #tpu.memory_space<vmem>>, %arg11: memref<8x128xf32, #tpu.memory_space<vmem>>, %arg12: memref<8x128xf32, #tpu.memory_space<vmem>>) attributes {dimension_semantics = [], scalar_prefetch = 0 : i64, scratch_operands = 0 : i64, tpu.core_type = #tpu.core_type<tc>} {
    %c0 = arith.constant 0 : index
    %c0_0 = arith.constant 0 : index
    %0 = vector.load %arg0[%c0, %c0_0] : memref<8x128xbf16, #tpu.memory_space<vmem>>, vector<8x128xbf16>
    %c0_1 = arith.constant 0 : index
    %c0_2 = arith.constant 0 : index
    %1 = vector.load %arg1[%c0_1, %c0_2] : memref<128x128xbf16, #tpu.memory_space<vmem>>, vector<128x128xbf16>
    %cst = arith.constant dense<0.000000e+00> : vector<8x128xf32>
    %2 = tpu.matmul %0, %1, %cst {dimension_numbers = #tpu.dot_dimension_numbers<[1], [0], [0], [1], [0, 0, 1, 1], [], []>} : vector<8x128xbf16>, vector<128x128xbf16>, vector<8x128xf32> -> vector<8x128xf32>
    %c0_3 = arith.constant 0 : index
    %c0_4 = arith.constant 0 : index
    %3 = vector.load %arg6[%c0_3, %c0_4] : memref<8x128xf32, #tpu.memory_space<vmem>>, vector<8x128xf32>
    %c0_5 = arith.constant 0 : index
    %c0_6 = arith.constant 0 : index
    %4 = vector.load %arg7[%c0_5, %c0_6] : memref<8x128xf32, #tpu.memory_space<vmem>>, vector<8x128xf32>
    %c0_7 = arith.constant 0 : index
    %c0_8 = arith.constant 0 : index
    %5 = vector.load %arg8[%c0_7, %c0_8] : memref<8x128xf32, #tpu.memory_space<vmem>>, vector<8x128xf32>
    %cst_9 = arith.constant 0.899999976 : f32
    %6 = vector.broadcast %cst_9 : f32 to vector<8x128xf32>
    %7 = arith.mulf %3, %6 : vector<8x128xf32>
    %8 = arith.addf %7, %2 : vector<8x128xf32>
    %cst_10 = arith.constant 1.000000e+00 : f32
    %9 = vector.broadcast %cst_10 : f32 to vector<8x128xf32>
    %10 = arith.cmpf ogt, %8, %9 : vector<8x128xf32>
    %11 = arith.extui %10 : vector<8x128xi1> to vector<8x128xi32>
    %12 = arith.sitofp %11 : vector<8x128xi32> to vector<8x128xf32>
    %cst_11 = arith.constant 1.000000e+00 : f32
    %13 = vector.broadcast %cst_11 : f32 to vector<8x128xf32>
    %14 = arith.mulf %12, %13 : vector<8x128xf32>
    %15 = arith.subf %8, %14 : vector<8x128xf32>
    %16 = arith.truncf %12 : vector<8x128xf32> to vector<8x128xbf16>
    %c0_12 = arith.constant 0 : index
    %c0_13 = arith.constant 0 : index
    %17 = vector.load %arg2[%c0_12, %c0_13] : memref<128x128xbf16, #tpu.memory_space<vmem>>, vector<128x128xbf16>
    %cst_14 = arith.constant dense<0.000000e+00> : vector<8x128xf32>
    %18 = tpu.matmul %16, %17, %cst_14 {dimension_numbers = #tpu.dot_dimension_numbers<[1], [0], [0], [1], [0, 0, 1, 1], [], []>} : vector<8x128xbf16>, vector<128x128xbf16>, vector<8x128xf32> -> vector<8x128xf32>
    %c0_15 = arith.constant 0 : index
    %c0_16 = arith.constant 0 : index
    %19 = vector.load %arg4[%c0_15, %c0_16] : memref<8x128xf32, #tpu.memory_space<vmem>>, vector<8x128xf32>
    %20 = arith.addf %18, %19 : vector<8x128xf32>
    %cst_17 = arith.constant 0.899999976 : f32
    %21 = vector.broadcast %cst_17 : f32 to vector<8x128xf32>
    %22 = arith.mulf %4, %21 : vector<8x128xf32>
    %23 = arith.addf %22, %20 : vector<8x128xf32>
    %cst_18 = arith.constant 1.000000e+00 : f32
    %24 = vector.broadcast %cst_18 : f32 to vector<8x128xf32>
    %25 = arith.cmpf ogt, %23, %24 : vector<8x128xf32>
    %26 = arith.extui %25 : vector<8x128xi1> to vector<8x128xi32>
    %27 = arith.sitofp %26 : vector<8x128xi32> to vector<8x128xf32>
    %cst_19 = arith.constant 1.000000e+00 : f32
    %28 = vector.broadcast %cst_19 : f32 to vector<8x128xf32>
    %29 = arith.mulf %27, %28 : vector<8x128xf32>
    %30 = arith.subf %23, %29 : vector<8x128xf32>
    %31 = arith.truncf %27 : vector<8x128xf32> to vector<8x128xbf16>
    %c0_20 = arith.constant 0 : index
    %c0_21 = arith.constant 0 : index
    %32 = vector.load %arg3[%c0_20, %c0_21] : memref<128x128xbf16, #tpu.memory_space<vmem>>, vector<128x128xbf16>
    %cst_22 = arith.constant dense<0.000000e+00> : vector<8x128xf32>
    %33 = tpu.matmul %31, %32, %cst_22 {dimension_numbers = #tpu.dot_dimension_numbers<[1], [0], [0], [1], [0, 0, 1, 1], [], []>} : vector<8x128xbf16>, vector<128x128xbf16>, vector<8x128xf32> -> vector<8x128xf32>
    %c0_23 = arith.constant 0 : index
    %c0_24 = arith.constant 0 : index
    %34 = vector.load %arg5[%c0_23, %c0_24] : memref<8x128xf32, #tpu.memory_space<vmem>>, vector<8x128xf32>
    %35 = arith.addf %33, %34 : vector<8x128xf32>
    %cst_25 = arith.constant 0.899999976 : f32
    %36 = vector.broadcast %cst_25 : f32 to vector<8x128xf32>
    %37 = arith.mulf %5, %36 : vector<8x128xf32>
    %38 = arith.addf %37, %35 : vector<8x128xf32>
    %cst_26 = arith.constant 1.000000e+00 : f32
    %39 = vector.broadcast %cst_26 : f32 to vector<8x128xf32>
    %40 = arith.cmpf ogt, %38, %39 : vector<8x128xf32>
    %41 = arith.extui %40 : vector<8x128xi1> to vector<8x128xi32>
    %42 = arith.sitofp %41 : vector<8x128xi32> to vector<8x128xf32>
    %cst_27 = arith.constant 1.000000e+00 : f32
    %43 = vector.broadcast %cst_27 : f32 to vector<8x128xf32>
    %44 = arith.mulf %42, %43 : vector<8x128xf32>
    %45 = arith.subf %38, %44 : vector<8x128xf32>
    %c0_28 = arith.constant 0 : index
    %c0_29 = arith.constant 0 : index
    %46 = vector.load %arg9[%c0_28, %c0_29] : memref<8x128xf32, #tpu.memory_space<vmem>>, vector<8x128xf32>
    tpu.vector_store %arg9[%c0_28, %c0_29], %42 {strides = array<i32>} : memref<8x128xf32, #tpu.memory_space<vmem>>, vector<8x128xf32>,
    %c0_30 = arith.constant 0 : index
    %c0_31 = arith.constant 0 : index
    %47 = vector.load %arg10[%c0_30, %c0_31] : memref<8x128xf32, #tpu.memory_space<vmem>>, vector<8x128xf32>
    tpu.vector_store %arg10[%c0_30, %c0_31], %15 {strides = array<i32>} : memref<8x128xf32, #tpu.memory_space<vmem>>, vector<8x128xf32>,
    %c0_32 = arith.constant 0 : index
    %c0_33 = arith.constant 0 : index
    %48 = vector.load %arg11[%c0_32, %c0_33] : memref<8x128xf32, #tpu.memory_space<vmem>>, vector<8x128xf32>
    tpu.vector_store %arg11[%c0_32, %c0_33], %30 {strides = array<i32>} : memref<8x128xf32, #tpu.memory_space<vmem>>, vector<8x128xf32>,
    %c0_34 = arith.constant 0 : index
    %c0_35 = arith.constant 0 : index
    %49 = vector.load %arg12[%c0_34, %c0_35] : memref<8x128xf32, #tpu.memory_space<vmem>>, vector<8x128xf32>
    tpu.vector_store %arg12[%c0_34, %c0_35], %45 {strides = array<i32>} : memref<8x128xf32, #tpu.memory_space<vmem>>, vector<8x128xf32>,
    return
  }
}

</mosaic_0001>

<llo_original>
// kernel: fn.1
$region0: #{fn.1}
  #allocation0 [shape = 'u32[]', space=smem, size = 0x4, offset = 0x4, fixed_abs, tag = 'smem constant byte address 0x4 - core index']
  #allocation1 [shape = 'u32[144,128]{1,0:T(1,128)}', space=vmem, size = 0x12000, scoped, tag = 'internal scratch']
  %s0 = inlined_call_operand.vmem [shape: bf16[8,128], index: 0, kind: input, shape index: {}]
  %s1 = inlined_call_operand.hbm [shape: bf16[128,128], index: 1, kind: input, shape index: {}]
  %s2 = inlined_call_operand.hbm [shape: bf16[128,128], index: 2, kind: input, shape index: {}]
  %s3 = inlined_call_operand.hbm [shape: bf16[128,128], index: 3, kind: input, shape index: {}]
  %s4 = inlined_call_operand.vmem [shape: f32[8,128], index: 4, kind: input, shape index: {}]
  %s5 = inlined_call_operand.vmem [shape: f32[8,128], index: 5, kind: input, shape index: {}]
  %s6 = inlined_call_operand.vmem [shape: f32[8,128], index: 6, kind: input, shape index: {}, may-alias: {6,10}]
  %s7 = inlined_call_operand.vmem [shape: f32[8,128], index: 7, kind: input, shape index: {}, may-alias: {7,11}]
  %s8 = inlined_call_operand.vmem [shape: f32[8,128], index: 8, kind: input, shape index: {}, may-alias: {8,12}]
  %s9 = inlined_call_operand.vmem [shape: f32[8,128], index: 9, kind: output, shape index: {0}]
  %s10 = inlined_call_operand.vmem [shape: f32[8,128], index: 10, kind: output, shape index: {1}, may-alias: {6,10}]
  %s11 = inlined_call_operand.vmem [shape: f32[8,128], index: 11, kind: output, shape index: {2}, may-alias: {7,11}]
  %s12 = inlined_call_operand.vmem [shape: f32[8,128], index: 12, kind: output, shape index: {3}, may-alias: {8,12}]
  %13 = xla_tuple %s9, %s10, %s11, %s12
  %s14 = sld [smem:[#allocation0]]
  $region82: #{fn.1} parent=0
    _
  %s16 = ssub.s32 1, %s14
  %s17 = scalar_select 0, %s16, %s14
  $region1: #{fn.1} parent=0
    #allocation2 [shape = 'u8[32768]{0}', space=vmem, size = 0x8000, scoped, tag = 'input window, operand 1, single buffered']
    #allocation3 [shape = 's32[1]{0}', space=sflag, size = 0x4, scoped, tag = 'scoped memory for fn.1']
    #allocation4 [shape = 'u8[32768]{0}', space=vmem, size = 0x8000, scoped, tag = 'input window, operand 2, single buffered']
    #allocation5 [shape = 's32[1]{0}', space=sflag, size = 0x4, scoped, tag = 'scoped memory for fn.1']
    #allocation6 [shape = 'u8[32768]{0}', space=vmem, size = 0x8000, scoped, tag = 'input window, operand 3, single buffered']
    %18 = vsyncpa [#allocation3], 0
    %19 = vsyncpa [#allocation5], 0
    // Predicated region
    $region2: #{fn.1} parent=1 // pred_check
      _
    $region3: #{fn.1} parent=1 // pred_check_branch
      %21 = sbr.rel (0) target = $region5
    $region4: #{fn.1} parent=1 // pred_region
      _
    $region5: #{fn.1} parent=1 // pred_fallthru
      _
    // Predicated region
    $region6: #{fn.1} parent=1 // pred_check
      _
    $region7: #{fn.1} parent=1 // pred_check_branch
      %23 = sbr.rel (0) target = $region9
    $region8: #{fn.1} parent=1 // pred_region
      %s25 = ssub.s32 1024, 1024
      %26 = vsyncadd [#allocation3], %s25
      %s27 = sshll.u32 [#allocation2], 4
      %s28 = int_to_ptr.vmem [resolvable:$true] %s27
      %33 = dma.hbm_to_vmem [thread:$0]  %s1, 1024, %s28, [#allocation3], 64, 64, 4
    $region9: #{fn.1} parent=1 // pred_fallthru
      _
    // Predicated region
    $region10: #{fn.1} parent=1 // pred_check
      _
    $region11: #{fn.1} parent=1 // pred_check_branch
      %35 = sbr.rel (0) target = $region13
    $region12: #{fn.1} parent=1 // pred_region
      %s37 = ssub.s32 1024, 1024
      %38 = vsyncadd [#allocation5], %s37
      %s39 = sshll.u32 [#allocation4], 4
      %s40 = int_to_ptr.vmem [resolvable:$true] %s39
      %45 = dma.hbm_to_vmem [thread:$0]  %s2, 1024, %s40, [#allocation5], 64, 64, 4
    $region13: #{fn.1} parent=1 // pred_fallthru
      _
    // Predicated region
    $region14: #{fn.1} parent=1 // pred_check
      _
    $region15: #{fn.1} parent=1 // pred_check_branch
      %47 = sbr.rel (0) target = $region17
    $region16: #{fn.1} parent=1 // pred_region
      %s49 = ssub.s32 1024, 1024
      %50 = vsyncadd [#allocation5], %s49
      %s51 = sshll.u32 [#allocation6], 4
      %s52 = int_to_ptr.vmem [resolvable:$true] %s51
      %57 = dma.hbm_to_vmem [thread:$0]  %s3, 1024, %s52, [#allocation5], 64, 64, 4
    $region17: #{fn.1} parent=1 // pred_fallthru
      _
    // Predicated region
    $region18: #{fn.1} parent=1 // pred_check
      _
    $region19: #{fn.1} parent=1 // pred_check_branch
      %59 = sbr.rel (0) target = $region21
    $region20: #{fn.1} parent=1 // pred_region
      _
    $region21: #{fn.1} parent=1 // pred_fallthru
      _
    // Predicated region
    $region22: #{fn.1} parent=1 // pred_check
      _
    $region23: #{fn.1} parent=1 // pred_check_branch
      %61 = sbr.rel (0) target = $region25
    $region24: #{fn.1} parent=1 // pred_region
      _
    $region25: #{fn.1} parent=1 // pred_fallthru
      _
    // Predicated region
    $region26: #{fn.1} parent=1 // pred_check
      _
    $region27: #{fn.1} parent=1 // pred_check_branch
      %63 = sbr.rel (0) target = $region29
    $region28: #{fn.1} parent=1 // pred_region
      _
    $region29: #{fn.1} parent=1 // pred_fallthru
      _
    // Predicated region
    $region30: #{fn.1} parent=1 // pred_check
      _
    $region31: #{fn.1} parent=1 // pred_check_branch
      %65 = sbr.rel (0) target = $region33
    $region32: #{fn.1} parent=1 // pred_region
      _
    $region33: #{fn.1} parent=1 // pred_fallthru
      _
    // Predicated region
    $region34: #{fn.1} parent=1 // pred_check
      _
    $region35: #{fn.1} parent=1 // pred_check_branch
      %67 = sbr.rel (0) target = $region37
    $region36: #{fn.1} parent=1 // pred_region
      _
    $region37: #{fn.1} parent=1 // pred_fallthru
      _
    // Predicated region
    $region38: #{fn.1} parent=1 // pred_check
      _
    $region39: #{fn.1} parent=1 // pred_check_branch
      %69 = sbr.rel (0) target = $region41
    $region40: #{fn.1} parent=1 // pred_region
      %70 = dma.done [#allocation3], 1024
    $region41: #{fn.1} parent=1 // pred_fallthru
      _
    // Predicated region
    $region42: #{fn.1} parent=1 // pred_check
      _
    $region43: #{fn.1} parent=1 // pred_check_branch
      %72 = sbr.rel (0) target = $region45
    $region44: #{fn.1} parent=1 // pred_region
      %73 = dma.done [#allocation5], 1024
    $region45: #{fn.1} parent=1 // pred_fallthru
      _
    // Predicated region
    $region46: #{fn.1} parent=1 // pred_check
      _
    $region47: #{fn.1} parent=1 // pred_check_branch
      %75 = sbr.rel (0) target = $region49
    $region48: #{fn.1} parent=1 // pred_region
      %76 = dma.done [#allocation5], 1024
    $region49: #{fn.1} parent=1 // pred_fallthru
      _
    %v78 = vld [vmem:[%s0] sm:$0xf]
    %v79 = vld [vmem:[#allocation2] sm:$0xf]
    %v80 = vld [vmem:[#allocation2 + $0x4] sm:$0xf]
    %v81 = vld [vmem:[#allocation2 + $0x8] sm:$0xf]
    %v82 = vld [vmem:[#allocation2 + $0xc] sm:$0xf]
    %v83 = vld [vmem:[#allocation2 + $0x10] sm:$0xf]
    %v84 = vld [vmem:[#allocation2 + $0x14] sm:$0xf]
    %v85 = vld [vmem:[#allocation2 + $0x18] sm:$0xf]
    %v86 = vld [vmem:[#allocation2 + $0x1c] sm:$0xf]
    %v87 = vld [vmem:[#allocation2 + $0x20] sm:$0xf]
    %v88 = vld [vmem:[#allocation2 + $0x24] sm:$0xf]
    %v89 = vld [vmem:[#allocation2 + $0x28] sm:$0xf]
    %v90 = vld [vmem:[#allocation2 + $0x2c] sm:$0xf]
    %v91 = vld [vmem:[#allocation2 + $0x30] sm:$0xf]
    %v92 = vld [vmem:[#allocation2 + $0x34] sm:$0xf]
    %v93 = vld [vmem:[#allocation2 + $0x38] sm:$0xf]
    %v94 = vld [vmem:[#allocation2 + $0x3c] sm:$0xf]
    %v111 = vunpack.c.l.b16 %v79
    %v112 = vunpack.c.l.b16 %v80
    %v113 = vunpack.c.l.b16 %v81
    %v114 = vunpack.c.l.b16 %v82
    %v115 = vunpack.c.l.b16 %v83
    %v116 = vunpack.c.l.b16 %v84
    %v117 = vunpack.c.l.b16 %v85
    %v118 = vunpack.c.l.b16 %v86
    %v119 = vunpack.c.l.b16 %v87
    %v120 = vunpack.c.l.b16 %v88
    %v121 = vunpack.c.l.b16 %v89
    %v122 = vunpack.c.l.b16 %v90
    %v123 = vunpack.c.l.b16 %v91
    %v124 = vunpack.c.l.b16 %v92
    %v125 = vunpack.c.l.b16 %v93
    %v126 = vunpack.c.l.b16 %v94
    %v127 = vpack.c.b16 %v112, %v111
    %v128 = vpack.c.b16 %v114, %v113
    %v129 = vpack.c.b16 %v116, %v115
    %v130 = vpack.c.b16 %v118, %v117
    %v131 = vpack.c.b16 %v120, %v119
    %v132 = vpack.c.b16 %v122, %v121
    %v133 = vpack.c.b16 %v124, %v123
    %v134 = vpack.c.b16 %v126, %v125
    %143 = vmatprep.subr.bf16.mxu0 0
    %144 = vmatpush1.bf16.msra.mxu0 %v134
    %145 = vmatprep.subr.bf16.mxu0 0
    %146 = vmatpush1.bf16.msra.mxu0 %v133
    %147 = vmatprep.subr.bf16.mxu0 0
    %148 = vmatpush1.bf16.msra.mxu0 %v132
    %149 = vmatprep.subr.bf16.mxu0 0
    %150 = vmatpush1.bf16.msra.mxu0 %v131
    %151 = vmatprep.subr.bf16.mxu0 0
    %152 = vmatpush1.bf16.msra.mxu0 %v130
    %153 = vmatprep.subr.bf16.mxu0 0
    %154 = vmatpush1.bf16.msra.mxu0 %v129
    %155 = vmatprep.subr.bf16.mxu0 0
    %156 = vmatpush1.bf16.msra.mxu0 %v128
    %157 = vmatprep.subr.bf16.mxu0 0
    %158 = vmatpush1.bf16.msra.mxu0 %v127
    %159 = vmatprep.subr.bf16.mxu0 0
    %160 = vmatpush2.bf16.msra.mxu0 0
    %161 = vmatprep.subr.bf16.mxu0 0
    %162 = vmatpush2.bf16.msra.mxu0 0
    %163 = vmatprep.subr.bf16.mxu0 0
    %164 = vmatpush2.bf16.msra.mxu0 0
    %165 = vmatprep.subr.bf16.mxu0 0
    %166 = vmatpush2.bf16.msra.mxu0 0
    %167 = vmatprep.subr.bf16.mxu0 0
    %168 = vmatpush2.bf16.msra.mxu0 0
    %169 = vmatprep.subr.bf16.mxu0 0
    %170 = vmatpush2.bf16.msra.mxu0 0
    %171 = vmatprep.subr.bf16.mxu0 0
    %172 = vmatpush2.bf16.msra.mxu0 0
    %173 = vmatprep.subr.bf16.mxu0 0
    %174 = vmatpush2.bf16.msra.mxu0 0
    %175 = vmatprep.mubr.bf16.mxu0 0
    %176 = vmatmul.mubr.bf16.gmra.mxu0 %v78
    %v177 = vpop.f32.mrf.mxu0
    %v178 = vadd.f32 0.0, %v177
    %v179 = vpop.f32.mrf.mxu0
    %v180 = vpop.f32.mrf.mxu0
    %v181 = vpop.f32.mrf.mxu0
    %182 = vdwg.mxu0
    %v183 = vld [vmem:[%s6] sm:$0xff]
    %v184 = vld [vmem:[%s7] sm:$0xff]
    %v185 = vld [vmem:[%s8] sm:$0xff]
    %v186 = vmul.f32 %v183, 0.9
    %v187 = vadd.f32 %v186, %v178
    %vm188 = vcmp.gt.f32.partialorder %v187, 1.0
    %v189 = vsel %vm188, 1, 0
    %v190 = vcvt.s32.f32 %v189
    %v191 = vsub.f32 %v187, %v190
    %v192 = vpack.c.bf16 %v190, %v190
    %v193 = vld [vmem:[#allocation4] sm:$0xf]
    %v194 = vld [vmem:[#allocation4 + $0x4] sm:$0xf]
    %v195 = vld [vmem:[#allocation4 + $0x8] sm:$0xf]
    %v196 = vld [vmem:[#allocation4 + $0xc] sm:$0xf]
    %v197 = vld [vmem:[#allocation4 + $0x10] sm:$0xf]
    %v198 = vld [vmem:[#allocation4 + $0x14] sm:$0xf]
    %v199 = vld [vmem:[#allocation4 + $0x18] sm:$0xf]
    %v200 = vld [vmem:[#allocation4 + $0x1c] sm:$0xf]
    %v201 = vld [vmem:[#allocation4 + $0x20] sm:$0xf]
    %v202 = vld [vmem:[#allocation4 + $0x24] sm:$0xf]
    %v203 = vld [vmem:[#allocation4 + $0x28] sm:$0xf]
    %v204 = vld [vmem:[#allocation4 + $0x2c] sm:$0xf]
    %v205 = vld [vmem:[#allocation4 + $0x30] sm:$0xf]
    %v206 = vld [vmem:[#allocation4 + $0x34] sm:$0xf]
    %v207 = vld [vmem:[#allocation4 + $0x38] sm:$0xf]
    %v208 = vld [vmem:[#allocation4 + $0x3c] sm:$0xf]
    %v209 = vld [vmem:[%s4] sm:$0xff]
    %v226 = vunpack.c.l.b16 %v193
    %v227 = vunpack.c.l.b16 %v194
    %v228 = vunpack.c.l.b16 %v195
    %v229 = vunpack.c.l.b16 %v196
    %v230 = vunpack.c.l.b16 %v197
    %v231 = vunpack.c.l.b16 %v198
    %v232 = vunpack.c.l.b16 %v199
    %v233 = vunpack.c.l.b16 %v200
    %v234 = vunpack.c.l.b16 %v201
    %v235 = vunpack.c.l.b16 %v202
    %v236 = vunpack.c.l.b16 %v203
    %v237 = vunpack.c.l.b16 %v204
    %v238 = vunpack.c.l.b16 %v205
    %v239 = vunpack.c.l.b16 %v206
    %v240 = vunpack.c.l.b16 %v207
    %v241 = vunpack.c.l.b16 %v208
    %v242 = vpack.c.b16 %v227, %v226
    %v243 = vpack.c.b16 %v229, %v228
    %v244 = vpack.c.b16 %v231, %v230
    %v245 = vpack.c.b16 %v233, %v232
    %v246 = vpack.c.b16 %v235, %v234
    %v247 = vpack.c.b16 %v237, %v236
    %v248 = vpack.c.b16 %v239, %v238
    %v249 = vpack.c.b16 %v241, %v240
    %258 = vmatprep.subr.bf16.mxu0 0
    %259 = vmatpush1.bf16.msra.mxu0 %v249
    %260 = vmatprep.subr.bf16.mxu0 0
    %261 = vmatpush1.bf16.msra.mxu0 %v248
    %262 = vmatprep.subr.bf16.mxu0 0
    %263 = vmatpush1.bf16.msra.mxu0 %v247
    %264 = vmatprep.subr.bf16.mxu0 0
    %265 = vmatpush1.bf16.msra.mxu0 %v246
    %266 = vmatprep.subr.bf16.mxu0 0
    %267 = vmatpush1.bf16.msra.mxu0 %v245
    %268 = vmatprep.subr.bf16.mxu0 0
    %269 = vmatpush1.bf16.msra.mxu0 %v244
    %270 = vmatprep.subr.bf16.mxu0 0
    %271 = vmatpush1.bf16.msra.mxu0 %v243
    %272 = vmatprep.subr.bf16.mxu0 0
    %273 = vmatpush1.bf16.msra.mxu0 %v242
    %274 = vmatprep.subr.bf16.mxu0 0
    %275 = vmatpush2.bf16.msra.mxu0 0
    %276 = vmatprep.subr.bf16.mxu0 0
    %277 = vmatpush2.bf16.msra.mxu0 0
    %278 = vmatprep.subr.bf16.mxu0 0
    %279 = vmatpush2.bf16.msra.mxu0 0
    %280 = vmatprep.subr.bf16.mxu0 0
    %281 = vmatpush2.bf16.msra.mxu0 0
    %282 = vmatprep.subr.bf16.mxu0 0
    %283 = vmatpush2.bf16.msra.mxu0 0
    %284 = vmatprep.subr.bf16.mxu0 0
    %285 = vmatpush2.bf16.msra.mxu0 0
    %286 = vmatprep.subr.bf16.mxu0 0
    %287 = vmatpush2.bf16.msra.mxu0 0
    %288 = vmatprep.subr.bf16.mxu0 0
    %289 = vmatpush2.bf16.msra.mxu0 0
    %290 = vmatprep.mubr.bf16.mxu0 0
    %291 = vmatmul.mubr.bf16.gmra.mxu0 %v192
    %v292 = vpop.f32.mrf.mxu0
    %v293 = vadd.f32 %v209, %v292
    %v294 = vpop.f32.mrf.mxu0
    %v295 = vpop.f32.mrf.mxu0
    %v296 = vpop.f32.mrf.mxu0
    %297 = vdwg.mxu0
    %v298 = vmul.f32 %v184, 0.9
    %v299 = vadd.f32 %v298, %v293
    %vm300 = vcmp.gt.f32.partialorder %v299, 1.0
    %v301 = vsel %vm300, 1, 0
    %v302 = vcvt.s32.f32 %v301
    %v303 = vsub.f32 %v299, %v302
    %v304 = vpack.c.bf16 %v302, %v302
    %v305 = vld [vmem:[#allocation6] sm:$0xf]
    %v306 = vld [vmem:[#allocation6 + $0x4] sm:$0xf]
    %v307 = vld [vmem:[#allocation6 + $0x8] sm:$0xf]
    %v308 = vld [vmem:[#allocation6 + $0xc] sm:$0xf]
    %v309 = vld [vmem:[#allocation6 + $0x10] sm:$0xf]
    %v310 = vld [vmem:[#allocation6 + $0x14] sm:$0xf]
    %v311 = vld [vmem:[#allocation6 + $0x18] sm:$0xf]
    %v312 = vld [vmem:[#allocation6 + $0x1c] sm:$0xf]
    %v313 = vld [vmem:[#allocation6 + $0x20] sm:$0xf]
    %v314 = vld [vmem:[#allocation6 + $0x24] sm:$0xf]
    %v315 = vld [vmem:[#allocation6 + $0x28] sm:$0xf]
    %v316 = vld [vmem:[#allocation6 + $0x2c] sm:$0xf]
    %v317 = vld [vmem:[#allocation6 + $0x30] sm:$0xf]
    %v318 = vld [vmem:[#allocation6 + $0x34] sm:$0xf]
    %v319 = vld [vmem:[#allocation6 + $0x38] sm:$0xf]
    %v320 = vld [vmem:[#allocation6 + $0x3c] sm:$0xf]
    %v321 = vld [vmem:[%s5] sm:$0xff]
    %v338 = vunpack.c.l.b16 %v305
    %v339 = vunpack.c.l.b16 %v306
    %v340 = vunpack.c.l.b16 %v307
    %v341 = vunpack.c.l.b16 %v308
    %v342 = vunpack.c.l.b16 %v309
    %v343 = vunpack.c.l.b16 %v310
    %v344 = vunpack.c.l.b16 %v311
    %v345 = vunpack.c.l.b16 %v312
    %v346 = vunpack.c.l.b16 %v313
    %v347 = vunpack.c.l.b16 %v314
    %v348 = vunpack.c.l.b16 %v315
    %v349 = vunpack.c.l.b16 %v316
    %v350 = vunpack.c.l.b16 %v317
    %v351 = vunpack.c.l.b16 %v318
    %v352 = vunpack.c.l.b16 %v319
    %v353 = vunpack.c.l.b16 %v320
    %v354 = vpack.c.b16 %v339, %v338
    %v355 = vpack.c.b16 %v341, %v340
    %v356 = vpack.c.b16 %v343, %v342
    %v357 = vpack.c.b16 %v345, %v344
    %v358 = vpack.c.b16 %v347, %v346
    %v359 = vpack.c.b16 %v349, %v348
    %v360 = vpack.c.b16 %v351, %v350
    %v361 = vpack.c.b16 %v353, %v352
    %370 = vmatprep.subr.bf16.mxu0 0
    %371 = vmatpush1.bf16.msra.mxu0 %v361
    %372 = vmatprep.subr.bf16.mxu0 0
    %373 = vmatpush1.bf16.msra.mxu0 %v360
    %374 = vmatprep.subr.bf16.mxu0 0
    %375 = vmatpush1.bf16.msra.mxu0 %v359
    %376 = vmatprep.subr.bf16.mxu0 0
    %377 = vmatpush1.bf16.msra.mxu0 %v358
    %378 = vmatprep.subr.bf16.mxu0 0
    %379 = vmatpush1.bf16.msra.mxu0 %v357
    %380 = vmatprep.subr.bf16.mxu0 0
    %381 = vmatpush1.bf16.msra.mxu0 %v356
    %382 = vmatprep.subr.bf16.mxu0 0
    %383 = vmatpush1.bf16.msra.mxu0 %v355
    %384 = vmatprep.subr.bf16.mxu0 0
    %385 = vmatpush1.bf16.msra.mxu0 %v354
    %386 = vmatprep.subr.bf16.mxu0 0
    %387 = vmatpush2.bf16.msra.mxu0 0
    %388 = vmatprep.subr.bf16.mxu0 0
    %389 = vmatpush2.bf16.msra.mxu0 0
    %390 = vmatprep.subr.bf16.mxu0 0
    %391 = vmatpush2.bf16.msra.mxu0 0
    %392 = vmatprep.subr.bf16.mxu0 0
    %393 = vmatpush2.bf16.msra.mxu0 0
    %394 = vmatprep.subr.bf16.mxu0 0
    %395 = vmatpush2.bf16.msra.mxu0 0
    %396 = vmatprep.subr.bf16.mxu0 0
    %397 = vmatpush2.bf16.msra.mxu0 0
    %398 = vmatprep.subr.bf16.mxu0 0
    %399 = vmatpush2.bf16.msra.mxu0 0
    %400 = vmatprep.subr.bf16.mxu0 0
    %401 = vmatpush2.bf16.msra.mxu0 0
    %402 = vmatprep.mubr.bf16.mxu0 0
    %403 = vmatmul.mubr.bf16.gmra.mxu0 %v304
    %v404 = vpop.f32.mrf.mxu0
    %v405 = vadd.f32 %v321, %v404
    %v406 = vpop.f32.mrf.mxu0
    %v407 = vpop.f32.mrf.mxu0
    %v408 = vpop.f32.mrf.mxu0
    %409 = vdwg.mxu0
    %v410 = vmul.f32 %v185, 0.9
    %v411 = vadd.f32 %v410, %v405
    %vm412 = vcmp.gt.f32.partialorder %v411, 1.0
    %v413 = vsel %vm412, 1, 0
    %v414 = vcvt.s32.f32 %v413
    %v415 = vsub.f32 %v411, %v414
    %416 = vst [vmem:[%s9] sm:$0xff] %v414
    %417 = vst [vmem:[%s10] sm:$0xff] %v191
    %418 = vst [vmem:[%s11] sm:$0xff] %v303
    %419 = vst [vmem:[%s12] sm:$0xff] %v415
    // Predicated region
    $region50: #{fn.1} parent=1 // pred_check
      _
    $region51: #{fn.1} parent=1 // pred_check_branch
      %421 = sbr.rel (0) target = $region53
    $region52: #{fn.1} parent=1 // pred_region
      _
    $region53: #{fn.1} parent=1 // pred_fallthru
      _
    // Predicated region
    $region54: #{fn.1} parent=1 // pred_check
      _
    $region55: #{fn.1} parent=1 // pred_check_branch
      %423 = sbr.rel (0) target = $region57
    $region56: #{fn.1} parent=1 // pred_region
      _
    $region57: #{fn.1} parent=1 // pred_fallthru
      _
    // Predicated region
    $region58: #{fn.1} parent=1 // pred_check
      _
    $region59: #{fn.1} parent=1 // pred_check_branch
      %425 = sbr.rel (0) target = $region61
    $region60: #{fn.1} parent=1 // pred_region
      _
    $region61: #{fn.1} parent=1 // pred_fallthru
      _
    // Predicated region
    $region62: #{fn.1} parent=1 // pred_check
      _
    $region63: #{fn.1} parent=1 // pred_check_branch
      %427 = sbr.rel (0) target = $region65
    $region64: #{fn.1} parent=1 // pred_region
      _
    $region65: #{fn.1} parent=1 // pred_fallthru
      _
    // Predicated region
    $region66: #{fn.1} parent=1 // pred_check
      _
    $region67: #{fn.1} parent=1 // pred_check_branch
      %429 = sbr.rel (0) target = $region69
    $region68: #{fn.1} parent=1 // pred_region
      _
    $region69: #{fn.1} parent=1 // pred_fallthru
      _
    // Predicated region
    $region70: #{fn.1} parent=1 // pred_check
      _
    $region71: #{fn.1} parent=1 // pred_check_branch
      %431 = sbr.rel (0) target = $region73
    $region72: #{fn.1} parent=1 // pred_region
      _
    $region73: #{fn.1} parent=1 // pred_fallthru
      _
    // Predicated region
    $region74: #{fn.1} parent=1 // pred_check
      _
    $region75: #{fn.1} parent=1 // pred_check_branch
      %433 = sbr.rel (0) target = $region77
    $region76: #{fn.1} parent=1 // pred_region
      _
    $region77: #{fn.1} parent=1 // pred_fallthru
      _
    // Predicated region
    $region78: #{fn.1} parent=1 // pred_check
      _
    $region79: #{fn.1} parent=1 // pred_check_branch
      %435 = sbr.rel (0) target = $region81
    $region80: #{fn.1} parent=1 // pred_region
      _
    $region81: #{fn.1} parent=1 // pred_fallthru
      _
    %436 = vsyncpa [#allocation3], 1
    %437 = vsyncpa [#allocation5], 1

</llo_original>
